<compile_context>
chip_gen: v7x
topology: tpu7x:2x2x1
jax: 0.10.0
libtpu: 0.0.40
codegen_flags: <defaults>
</compile_context>

<pallas_src>
import functools
import math

import jax
import jax.numpy as jnp
from jax.experimental import pallas as pl
from jax.experimental.pallas import tpu as pltpu


_VMEM_LIMIT = 32 * 1024 * 1024
_TM_PREFS = (512, 256, 128, 64, 32, 16, 8)   # M / Sq tiles: 256-multiples first (v6e/v7x MXU)
_TN_PREFS = (512, 384, 256, 128)             # lane-dense N tiles


def _pick(n, prefs):
    for t in prefs:
        if n % t == 0:
            return t
    return n  # fall back to the full (untiled) dimension


def _erf(x):
    # Abramowitz & Stegun 7.1.26 (|err| ~ 1.5e-7). PyTorch F.gelu uses exact erf.
    a1, a2, a3, a4, a5 = 0.254829592, -0.284496736, 1.421413741, -1.453152027, 1.061405429
    p = 0.3275911
    s = jnp.where(x >= 0.0, 1.0, -1.0)
    ax = jnp.abs(x)
    t = 1.0 / (1.0 + p * ax)
    poly = ((((a5 * t + a4) * t + a3) * t + a2) * t + a1) * t
    return s * (1.0 - poly * jnp.exp(-ax * ax))


# ----------------------------- fused matmul ----------------------------------
# out = epilogue( prologue(A) @ W + bias )
#   prologue: optional per-sample GroupNorm affine (scale/shift) OR LayerNorm
#   epilogue: optional GEGLU gate (second matmul + gelu) and/or residual add

def _fused_mm_kernel(*refs, gn, ln, geglu, has_res, ln_eps):
    it = iter(refs)
    a_ref = next(it)
    if gn:
        sc_ref, sh_ref = next(it), next(it)
    if ln:
        g_ref, beta_ref = next(it), next(it)
    w_ref, bias_ref = next(it), next(it)
    if geglu:
        wg_ref, bg_ref = next(it), next(it)
    if has_res:
        res_ref = next(it)
    o_ref = next(it)

    a = a_ref[...].astype(jnp.float32)                               # (tm, K)
    if gn:                                                           # GroupNorm affine
        a = a * sc_ref[0] + sh_ref[0]                                # (1, K) broadcast
    if ln:                                                           # LayerNorm prologue
        mean = jnp.mean(a, axis=-1, keepdims=True)
        ac = a - mean
        var = jnp.mean(ac * ac, axis=-1, keepdims=True)
        a = ac * jax.lax.rsqrt(var + ln_eps) * g_ref[...] + beta_ref[...]
    ab = a.astype(jnp.bfloat16)

    acc = jnp.dot(ab, w_ref[...], preferred_element_type=jnp.float32) + bias_ref[...]
    if geglu:
        g = jnp.dot(ab, wg_ref[...], preferred_element_type=jnp.float32) + bg_ref[...]
        acc = acc * (0.5 * g * (1.0 + _erf(g * (1.0 / math.sqrt(2.0)))))
    if has_res:
        acc = acc + res_ref[...].astype(jnp.float32)
    o_ref[...] = acc.astype(o_ref.dtype)


def fused_matmul(a, w, bias, *, ln_params=None, gn_params=None, geglu=None,
                 res=None, out_dtype=jnp.bfloat16, ln_eps=1e-5):
    """a: (M,K) f32/bf16. w: (K,Np) bf16 pre-transposed. bias: (1,Np) f32.
    ln_params: (gamma (1,K), beta (1,K)).  gn_params: (scale (B,1,K), shift (B,1,K)),
    M must equal B*rows.  geglu: (wg (K,Np), bg (1,Np)).  res: (M,Np)."""
    M, K = a.shape
    Kw, Np = w.shape
    assert K == Kw, (K, Kw)
    if gn_params is not None:
        scale, shift = gn_params
        B = scale.shape[0]
    else:
        B = 1
    rows = M // B
    assert rows * B == M and rows % 8 == 0, (M, B)
    # TODO(synk): ragged row counts (e.g. context length 77) would need M padding here.
    tm = _pick(rows, _TM_PREFS)
    tn = _pick(Np, _TN_PREFS)
    mi = rows // tm
    nj = Np // tn

    idx_a = lambda b, i, j: (b * mi + i, 0)
    idx_w = lambda b, i, j: (0, j)
    idx_o = lambda b, i, j: (b * mi + i, j)
    idx_c = lambda b, i, j: (0, 0)
    idx_s = lambda b, i, j: (b, 0, 0)

    in_specs = [pl.BlockSpec((tm, K), idx_a)]
    args = [a]
    if gn_params is not None:
        in_specs += [pl.BlockSpec((1, 1, K), idx_s), pl.BlockSpec((1, 1, K), idx_s)]
        args += [scale, shift]
    if ln_params is not None:
        gamma, beta = ln_params
        in_specs += [pl.BlockSpec((1, K), idx_c), pl.BlockSpec((1, K), idx_c)]
        args += [gamma, beta]
    in_specs += [pl.BlockSpec((K, tn), idx_w), pl.BlockSpec((1, tn), idx_w)]
    args += [w, bias]
    if geglu is not None:
        wg, bg = geglu
        in_specs += [pl.BlockSpec((K, tn), idx_w), pl.BlockSpec((1, tn), idx_w)]
        args += [wg, bg]
    if res is not None:
        in_specs += [pl.BlockSpec((tm, tn), idx_o)]
        args += [res]

    kernel = functools.partial(
        _fused_mm_kernel, gn=gn_params is not None, ln=ln_params is not None,
        geglu=geglu is not None, has_res=res is not None, ln_eps=ln_eps)

    return pl.pallas_call(
        kernel,
        out_shape=jax.ShapeDtypeStruct((M, Np), out_dtype),
        grid_spec=pltpu.PrefetchScalarGridSpec(
            num_scalar_prefetch=0,
            grid=(B, mi, nj),
            in_specs=in_specs,
            out_specs=pl.BlockSpec((tm, tn), idx_o)),
        compiler_params=pltpu.CompilerParams(
            dimension_semantics=("parallel", "parallel", "parallel"),
            vmem_limit_bytes=_VMEM_LIMIT),
    )(*args)


# ----------------------------- GroupNorm stats pass ---------------------------

def _gn_stats_kernel(x_ref, sum_ref, sq_ref):
    @pl.when(pl.program_id(1) == 0)
    def _():
        sum_ref[...] = jnp.zeros_like(sum_ref)
        sq_ref[...] = jnp.zeros_like(sq_ref)
    x = x_ref[0].astype(jnp.float32)                     # (ts, C)
    sum_ref[0] = sum_ref[0] + jnp.sum(x, axis=0, keepdims=True)
    sq_ref[0] = sq_ref[0] + jnp.sum(x * x, axis=0, keepdims=True)


def groupnorm_scale_shift(x_t, n, s, gamma, beta, *, num_groups=32, eps=1e-6):
    """Pallas per-channel sum/sum-sq over the sequence layout, then tiny (n, G)
    math in XLA to produce per-(sample, channel) scale/shift that the conv_input
    matmul consumes as its prologue."""
    C = x_t.shape[1]
    x3 = x_t.reshape(n, s, C)
    ts = _pick(s, _TM_PREFS)
    sums, sqs = pl.pallas_call(
        _gn_stats_kernel,
        out_shape=(jax.ShapeDtypeStruct((n, 1, C), jnp.float32),
                   jax.ShapeDtypeStruct((n, 1, C), jnp.float32)),
        grid_spec=pltpu.PrefetchScalarGridSpec(
            num_scalar_prefetch=0,
            grid=(n, s // ts),
            in_specs=[pl.BlockSpec((1, ts, C), lambda b, i: (b, i, 0))],
            out_specs=(pl.BlockSpec((1, 1, C), lambda b, i: (b, 0, 0)),
                       pl.BlockSpec((1, 1, C), lambda b, i: (b, 0, 0)))),
        compiler_params=pltpu.CompilerParams(
            dimension_semantics=("parallel", "arbitrary"),
            vmem_limit_bytes=_VMEM_LIMIT),
    )(x3)
    cg = C // num_groups
    cnt = float(s * cg)
    sg = sums.reshape(n, num_groups, cg).sum(-1)
    sqg = sqs.reshape(n, num_groups, cg).sum(-1)
    mean = sg / cnt
    var = sqg / cnt - mean * mean
    rstd = jax.lax.rsqrt(var + eps)
    mean_c = jnp.repeat(mean, cg, axis=1)                # (n, C)
    rstd_c = jnp.repeat(rstd, cg, axis=1)
    scale = rstd_c * gamma.reshape(1, C)
    shift = beta.reshape(1, C) - mean_c * scale
    return scale.reshape(n, 1, C), shift.reshape(n, 1, C)


# ----------------------------- attention --------------------------------------

def _attention_kernel(q_ref, k_ref, v_ref, o_ref, *, n_head, dh):
    # q carries the 1/sqrt(dh) scale (folded into the projection weights).
    # Heads are split by static lane slices inside the kernel; the output block
    # stays lane-dense (tq, C).
    # TODO(synk): full-Sk softmax per block; switch to an online-softmax Sk loop
    #   if Sk * tq scores ever outgrow VMEM.
    for h in range(n_head):
        sl = slice(h * dh, (h + 1) * dh)
        qh = q_ref[0, :, sl]                                       # (tq, dh) bf16
        kh = k_ref[0, :, sl]                                       # (Sk, dh) bf16
        vh = v_ref[0, :, sl]
        s = jnp.einsum('qd,kd->qk', qh, kh,
                       preferred_element_type=jnp.float32)         # (tq, Sk)
        m = jnp.max(s, axis=-1, keepdims=True)
        p = jnp.exp(s - m)
        l = jnp.sum(p, axis=-1, keepdims=True)
        p = (p * pl.reciprocal(l, approx=True)).astype(vh.dtype)
        o_ref[0, :, sl] = jnp.dot(
            p, vh, preferred_element_type=jnp.float32).astype(o_ref.dtype)


def pallas_attention(q, k, v, n_head):
    """q: (N, Sq, C) bf16, k/v: (N, Sk, C) bf16 — lane-dense, heads split in-kernel."""
    n, sq, C = q.shape
    sk = k.shape[1]
    dh = C // n_head
    tq = _pick(sq, _TM_PREFS)
    return pl.pallas_call(
        functools.partial(_attention_kernel, n_head=n_head, dh=dh),
        out_shape=jax.ShapeDtypeStruct((n, sq, C), jnp.bfloat16),
        grid_spec=pltpu.PrefetchScalarGridSpec(
            num_scalar_prefetch=0,
            grid=(n, sq // tq),
            in_specs=[pl.BlockSpec((1, tq, C), lambda b, i: (b, i, 0)),
                      pl.BlockSpec((1, sk, C), lambda b, i: (b, 0, 0)),
                      pl.BlockSpec((1, sk, C), lambda b, i: (b, 0, 0))],
            out_specs=pl.BlockSpec((1, tq, C), lambda b, i: (b, i, 0))),
        compiler_params=pltpu.CompilerParams(
            dimension_semantics=("parallel", "parallel"),
            vmem_limit_bytes=_VMEM_LIMIT),
    )(q, k, v)


# ----------------------------- parameters --------------------------------------

class _Rng:
    def __init__(self, seed):
        self.key = jax.random.PRNGKey(seed)
        self.i = 0

    def normal(self, shape, scale):
        self.i += 1
        return scale * jax.random.normal(jax.random.fold_in(self.key, self.i),
                                         shape, jnp.float32)


def _prep_linear(w, b):
    """Torch-layout (out,in) weight -> (in,out) bf16, plus (1,out) f32 bias."""
    out_f, _ = w.shape
    wt = w.T.astype(jnp.bfloat16)
    bb = jnp.zeros((out_f,), jnp.float32) if b is None else b.astype(jnp.float32)
    return {'w': wt, 'b': bb.reshape(1, out_f)}


def init_params(seed, n_head, n_embd, d_context=768):
    C = n_head * n_embd
    dh = C // n_head
    scale = 1.0 / math.sqrt(dh)
    rng = _Rng(seed)

    def lin_w(out_f, in_f):
        return rng.normal((out_f, in_f), 1.0 / math.sqrt(in_f))

    def lin_b(out_f):
        return rng.normal((out_f,), 0.02)

    w_conv_in, b_conv_in = lin_w(C, C), lin_b(C)          # 1x1 conv == linear over channels
    w_in_proj = lin_w(3 * C, C)                           # SelfAttention in_proj (no bias)
    w_attn1_out, b_attn1_out = lin_w(C, C), lin_b(C)
    w_q2 = lin_w(C, C)                                    # CrossAttention projections (no bias)
    w_k2 = lin_w(C, d_context)
    w_v2 = lin_w(C, d_context)
    w_attn2_out, b_attn2_out = lin_w(C, C), lin_b(C)
    w_geglu1, b_geglu1 = lin_w(8 * C, C), lin_b(8 * C)
    w_geglu2, b_geglu2 = lin_w(C, 4 * C), lin_b(C)
    w_conv_out, b_conv_out = lin_w(C, C), lin_b(C)

    # fold the 1/sqrt(dh) attention scale into the f32 q-projection weights
    w_q1 = w_in_proj[:C] * scale
    w_k1 = w_in_proj[C:2 * C]
    w_v1 = w_in_proj[2 * C:]
    w_q2 = w_q2 * scale

    ln = lambda: (jnp.ones((1, C), jnp.float32), jnp.zeros((1, C), jnp.float32))
    return {
        'n_head': n_head, 'C': C,
        'gn_g': jnp.ones((C,), jnp.float32), 'gn_b': jnp.zeros((C,), jnp.float32),
        'ln1': ln(), 'ln2': ln(), 'ln3': ln(),
        'conv_in': _prep_linear(w_conv_in, b_conv_in),
        'q1': _prep_linear(w_q1, None),
        'k1': _prep_linear(w_k1, None),
        'v1': _prep_linear(w_v1, None),
        'attn1_out': _prep_linear(w_attn1_out, b_attn1_out),
        'q2': _prep_linear(w_q2, None),
        'k2': _prep_linear(w_k2, None),
        'v2': _prep_linear(w_v2, None),
        'attn2_out': _prep_linear(w_attn2_out, b_attn2_out),
        'geglu1_x': _prep_linear(w_geglu1[:4 * C], b_geglu1[:4 * C]),
        'geglu1_g': _prep_linear(w_geglu1[4 * C:], b_geglu1[4 * C:]),
        'geglu2': _prep_linear(w_geglu2, b_geglu2),
        'conv_out': _prep_linear(w_conv_out, b_conv_out),
    }


# ----------------------------- forward pass -------------------------------------

def unet_attention_block(p, x, context):
    N, C, H, W = x.shape
    n_head = p['n_head']
    S = H * W
    Sc, Dc = context.shape[1], context.shape[2]

    # (N,C,H,W) -> (N*S, C): single XLA layout pass, result doubles as the long residual.
    # TODO(synk): the NCHW<->NSC transposes stay in XLA; folding them into the conv
    #   matmuls would require an in-kernel transpose of the A operand.
    x_t = x.reshape(N, C, S).transpose(0, 2, 1).reshape(N * S, C)

    # GroupNorm(32, eps=1e-6): Pallas stats pass, normalize fused into conv_input.
    gn_scale, gn_shift = groupnorm_scale_shift(x_t, N, S, p['gn_g'], p['gn_b'],
                                               num_groups=32, eps=1e-6)
    h = fused_matmul(x_t, p['conv_in']['w'], p['conv_in']['b'],
                     gn_params=(gn_scale, gn_shift))                      # (N*S, C) bf16

    # ---- self attention: LN1 fused into q/k/v projections, +residual fused into out_proj
    res = h
    q = fused_matmul(h, p['q1']['w'], p['q1']['b'], ln_params=p['ln1'])
    k = fused_matmul(h, p['k1']['w'], p['k1']['b'], ln_params=p['ln1'])
    v = fused_matmul(h, p['v1']['w'], p['v1']['b'], ln_params=p['ln1'])
    att = pallas_attention(q.reshape(N, S, C), k.reshape(N, S, C), v.reshape(N, S, C), n_head)
    h = fused_matmul(att.reshape(N * S, C), p['attn1_out']['w'], p['attn1_out']['b'], res=res)

    # ---- cross attention
    res = h
    ctx2 = context.reshape(N * Sc, Dc)
    q = fused_matmul(h, p['q2']['w'], p['q2']['b'], ln_params=p['ln2'])
    k = fused_matmul(ctx2, p['k2']['w'], p['k2']['b'])
    v = fused_matmul(ctx2, p['v2']['w'], p['v2']['b'])
    att = pallas_attention(q.reshape(N, S, C), k.reshape(N, Sc, C), v.reshape(N, Sc, C), n_head)
    h = fused_matmul(att.reshape(N * S, C), p['attn2_out']['w'], p['attn2_out']['b'], res=res)

    # ---- GEGLU feed-forward: LN3 + gelu gate fused into geglu1, +residual into geglu2
    res = h
    hg = fused_matmul(h, p['geglu1_x']['w'], p['geglu1_x']['b'], ln_params=p['ln3'],
                      geglu=(p['geglu1_g']['w'], p['geglu1_g']['b']))     # (N*S, 4C) bf16
    h = fused_matmul(hg, p['geglu2']['w'], p['geglu2']['b'], res=res)

    # ---- 1x1 conv_output fused with the long residual add; emit f32 module output
    h = fused_matmul(h, p['conv_out']['w'], p['conv_out']['b'], res=x_t,
                     out_dtype=jnp.float32)

    return h.reshape(N, S, C).transpose(0, 2, 1).reshape(N, C, H, W)


# ----------------------------- main ---------------------------------------------

if __name__ == "__main__":
    key = jax.random.PRNGKey(0)
    kx, kc = jax.random.split(key, 2)
    # channels = n_head * n_embd = 320 (divisible by 32 for GroupNorm), 8x8 latent, seq=8 context
    N, n_head, n_embd, H, W, Sc, Dc = 2, 8, 40, 8, 8, 8, 768
    C = n_head * n_embd
    x = jax.random.normal(kx, (N, C, H, W), jnp.float32)
    context = jax.random.normal(kc, (N, Sc, Dc), jnp.float32)

    params = init_params(seed=42, n_head=n_head, n_embd=n_embd, d_context=Dc)
    out = unet_attention_block(params, x, context)
    out = jax.block_until_ready(out)

    assert out.shape == (N, C, H, W), out.shape
    assert bool(jnp.all(jnp.isfinite(out)))
    print("KERNEL_OK")
</pallas_src>

<mosaic_0001>
module attributes {stable_mosaic.version = 11 : i64} {
  func.func @_gn_stats_kernel(%arg0: i32, %arg1: i32, %arg2: memref<1x64x320xf32, #tpu.memory_space<vmem>>, %arg3: memref<1x1x320xf32, #tpu.memory_space<vmem>>, %arg4: memref<1x1x320xf32, #tpu.memory_space<vmem>>) attributes {dimension_semantics = [#tpu.dimension_semantics<parallel>, #tpu.dimension_semantics<arbitrary>], iteration_bounds = array<i64: 2, 1>, scalar_prefetch = 0 : i64, scratch_operands = 0 : i64, tpu.core_type = #tpu.core_type<tc>, window_params = [{transform_indices = @transform_0, window_bounds = array<i64: 1, 64, 320>}, {transform_indices = @transform_1, window_bounds = array<i64: 1, 1, 320>}, {transform_indices = @transform_2, window_bounds = array<i64: 1, 1, 320>}]} {
    %c0_i32 = arith.constant 0 : i32
    %0 = arith.cmpi eq, %arg1, %c0_i32 : i32
    %1 = arith.extui %0 : i1 to i32
    %c0_i32_0 = arith.constant 0 : i32
    %2 = arith.cmpi ne, %1, %c0_i32_0 : i32
    scf.if %2 {
      %cst_16 = arith.constant 0.000000e+00 : f32
      %22 = vector.broadcast %cst_16 : f32 to vector<1x1x320xf32>
      %c0_17 = arith.constant 0 : index
      %c0_18 = arith.constant 0 : index
      %c0_19 = arith.constant 0 : index
      %23 = vector.load %arg3[%c0_17, %c0_18, %c0_19] : memref<1x1x320xf32, #tpu.memory_space<vmem>>, vector<1x1x320xf32>
      tpu.vector_store %arg3[%c0_17, %c0_18, %c0_19], %22 {strides = array<i32>} : memref<1x1x320xf32, #tpu.memory_space<vmem>>, vector<1x1x320xf32>,
      %cst_20 = arith.constant 0.000000e+00 : f32
      %24 = vector.broadcast %cst_20 : f32 to vector<1x1x320xf32>
      %c0_21 = arith.constant 0 : index
      %c0_22 = arith.constant 0 : index
      %c0_23 = arith.constant 0 : index
      %25 = vector.load %arg4[%c0_21, %c0_22, %c0_23] : memref<1x1x320xf32, #tpu.memory_space<vmem>>, vector<1x1x320xf32>
      tpu.vector_store %arg4[%c0_21, %c0_22, %c0_23], %24 {strides = array<i32>} : memref<1x1x320xf32, #tpu.memory_space<vmem>>, vector<1x1x320xf32>,
    } else {
    }
    %c0 = arith.constant 0 : index
    %c0_1 = arith.constant 0 : index
    %c0_2 = arith.constant 0 : index
    %3 = vector.load %arg2[%c0, %c0_1, %c0_2] : memref<1x64x320xf32, #tpu.memory_space<vmem>>, vector<1x64x320xf32>
    %4 = vector.shape_cast %3 : vector<1x64x320xf32> to vector<64x320xf32>
    %c0_3 = arith.constant 0 : index
    %c0_4 = arith.constant 0 : index
    %c0_5 = arith.constant 0 : index
    %5 = vector.load %arg3[%c0_3, %c0_4, %c0_5] : memref<1x1x320xf32, #tpu.memory_space<vmem>>, vector<1x1x320xf32>
    %6 = vector.shape_cast %5 : vector<1x1x320xf32> to vector<1x320xf32>
    %cst = arith.constant dense<0.000000e+00> : vector<320xf32>
    %7 = vector.multi_reduction <add>, %4, %cst [0] : vector<64x320xf32> to vector<320xf32>
    %8 = vector.shape_cast %7 : vector<320xf32> to vector<1x320xf32>
    %9 = arith.addf %6, %8 : vector<1x320xf32>
    %c0_6 = arith.constant 0 : index
    %c0_7 = arith.constant 0 : index
    %c0_8 = arith.constant 0 : index
    %10 = vector.load %arg3[%c0_6, %c0_7, %c0_8] : memref<1x1x320xf32, #tpu.memory_space<vmem>>, vector<1x1x320xf32>
    %11 = vector.shape_cast %10 : vector<1x1x320xf32> to vector<1x320xf32>
    %12 = vector.shape_cast %9 : vector<1x320xf32> to vector<1x1x320xf32>
    tpu.vector_store %arg3[%c0_6, %c0_7, %c0_8], %12 {strides = array<i32>} : memref<1x1x320xf32, #tpu.memory_space<vmem>>, vector<1x1x320xf32>,
    %c0_9 = arith.constant 0 : index
    %c0_10 = arith.constant 0 : index
    %c0_11 = arith.constant 0 : index
    %13 = vector.load %arg4[%c0_9, %c0_10, %c0_11] : memref<1x1x320xf32, #tpu.memory_space<vmem>>, vector<1x1x320xf32>
    %14 = vector.shape_cast %13 : vector<1x1x320xf32> to vector<1x320xf32>
    %15 = arith.mulf %4, %4 : vector<64x320xf32>
    %cst_12 = arith.constant dense<0.000000e+00> : vector<320xf32>
    %16 = vector.multi_reduction <add>, %15, %cst_12 [0] : vector<64x320xf32> to vector<320xf32>
    %17 = vector.shape_cast %16 : vector<320xf32> to vector<1x320xf32>
    %18 = arith.addf %14, %17 : vector<1x320xf32>
    %c0_13 = arith.constant 0 : index
    %c0_14 = arith.constant 0 : index
    %c0_15 = arith.constant 0 : index
    %19 = vector.load %arg4[%c0_13, %c0_14, %c0_15] : memref<1x1x320xf32, #tpu.memory_space<vmem>>, vector<1x1x320xf32>
    %20 = vector.shape_cast %19 : vector<1x1x320xf32> to vector<1x320xf32>
    %21 = vector.shape_cast %18 : vector<1x320xf32> to vector<1x1x320xf32>
    tpu.vector_store %arg4[%c0_13, %c0_14, %c0_15], %21 {strides = array<i32>} : memref<1x1x320xf32, #tpu.memory_space<vmem>>, vector<1x1x320xf32>,
    return
  }
  func.func @transform_0(%arg0: i32, %arg1: i32) -> (i32, i32, i32) {
    %c0_i32 = arith.constant 0 : i32
    %c0_i32_0 = arith.constant 0 : i32
    return %arg0, %arg1, %c0_i32 : i32, i32, i32
  }
  func.func @transform_1(%arg0: i32, %arg1: i32) -> (i32, i32, i32) {
    %c0_i32 = arith.constant 0 : i32
    %c0_i32_0 = arith.constant 0 : i32
    %c0_i32_1 = arith.constant 0 : i32
    return %arg0, %c0_i32, %c0_i32_0 : i32, i32, i32
  }
  func.func @transform_2(%arg0: i32, %arg1: i32) -> (i32, i32, i32) {
    %c0_i32 = arith.constant 0 : i32
    %c0_i32_0 = arith.constant 0 : i32
    %c0_i32_1 = arith.constant 0 : i32
    return %arg0, %c0_i32, %c0_i32_0 : i32, i32, i32
  }
}

</mosaic_0001>

<llo_original>
// kernel: tpu_custom_call.1
$region0: #{tpu_custom_call.1}
  #allocation0 [shape = 'u32[]', space=smem, size = 0x4, offset = 0x4, fixed_abs, tag = 'smem constant byte address 0x4 - core index']
  #allocation1 [shape = 'u32[144,128]{1,0:T(1,128)}', space=vmem, size = 0x12000, scoped, tag = 'internal scratch']
  %s0 = inlined_call_operand.hbm [shape: f32[2,64,320], index: 0, kind: input, shape index: {}]
  %s1 = inlined_call_operand.hbm [shape: f32[2,1,320], index: 1, kind: output, shape index: {0}]
  %s2 = inlined_call_operand.hbm [shape: f32[2,1,320], index: 2, kind: output, shape index: {1}]
  %3 = xla_tuple %s1, %s2
  %s4 = sld [smem:[#allocation0]]
  $region53: #{tpu_custom_call.1} parent=0
    _
  %s6 = ssub.s32 1, %s4
  %s7 = scalar_select 0, %s6, %s4
  $region1: #{tpu_custom_call.1} parent=0
    #allocation2 [shape = 'u8[196608]{0}', space=vmem, size = 0x30000, scoped, tag = 'input window, operand 0']
    #allocation3 [shape = 's32[2]{0}', space=sflag, size = 0x8, scoped, tag = 'scoped memory for tpu_custom_call.1']
    #allocation4 [shape = 's32[2]{0}', space=sflag, size = 0x8, scoped, tag = 'scoped memory for tpu_custom_call.1']
    #allocation5 [shape = 'u8[3072]{0}', space=vmem, size = 0xc00, scoped, tag = 'output window, operand 0']
    #allocation6 [shape = 'u8[3072]{0}', space=vmem, size = 0xc00, scoped, tag = 'output window, operand 1']
    #allocation7 [shape = 's32[2]{0}', space=sflag, size = 0x8, scoped, tag = 'scoped memory for tpu_custom_call.1']
    %8 = vsyncpa [#allocation3], 0
    %s9 = scalar_lea.sflag [#allocation3], 1
    %10 = vsyncpa %s9, 0
    %11 = vsyncpa [#allocation4], 0
    %s12 = scalar_lea.sflag [#allocation4], 1
    %13 = vsyncpa %s12, 0
    %14 = vsyncpa [#allocation7], 0
    %s15 = scalar_lea.sflag [#allocation7], 1
    %16 = vsyncpa %s15, 0
    loop: start=0, step=1, limit=4
    $region2: #{tpu_custom_call.1} parent=1 // loop_pre_header
      _
    $region3: #{tpu_custom_call.1} parent=1 // loop_header
      %s18 = sphi 0, %s22
      %p19 = scmp.ge.s32.totalorder %s18, 4
      %s25 = sphi 0, %s37
      %s26 = sphi 0, %s33
      %s27 = sphi 0, %s25
      %s28 = sphi 0, %s26
      %s29 = sphi 0, %s27
      %s30 = sphi 0, %s28
      %s42 = sphi 0, %s44
      %s45 = sphi 0, %s42
      %s46 = sphi 0, %s45
      %s62 = sphi 0, %s46
      %s68 = sphi 0, %s70
      %s71 = sphi 0, %s68
      %s72 = sphi 0, %s71
      %s88 = sphi 0, %s72
      %s94 = sphi 0, %s96
      %s97 = sphi 0, %s94
      %s98 = sphi 0, %s97
      %s114 = sphi 0, %s98
    $region4: #{tpu_custom_call.1} parent=1 // loop_header_branch
      %21 = sbr.rel (%p19) target = $region8
    $region5: #{tpu_custom_call.1} parent=1 // loop_body
      %s23 = ssub.s32 %s18, 1
      %s24 = ssub.s32 %s18, 2
      %s31 = sadd.s32 1, %s26
      %p32 = scmp.ge.s32.totalorder %s31, 1
      %s33 = scalar_select %p32, 0, %s31
      %s34 = sadd.s32 1, %s25
      %s35 = scalar_select %p32, %s34, %s25
      %p36 = scmp.ge.s32.totalorder %s35, 2
      %s37 = scalar_select %p36, 0, %s35
      %s38 = ssub.s32 %s25, %s37
      %s39 = ssub.s32 %s26, %s33
      %s40 = sor.u32 %s38, %s39
      %p41 = scmp.eq.s32.totalorder %s40, 0
      %s43 = sadd.s32 %s42, 1
      %s44 = scalar_select %p41, %s42, %s43
      %p47 = pneg %p41
      %p48 = scmp.eq.s32.totalorder %s18, 1
      %p49 = por %p47, %p48
      %p50 = scmp.ne.s32.totalorder %s42, %s45
      %p51 = scmp.eq.s32.totalorder %s18, 0
      %p52 = por %p50, %p51
      %p53 = scmp.ne.s32.totalorder %s42, %s45
      %p54 = scmp.eq.s32.totalorder %s23, 1
      %p55 = por %p53, %p54
      %p56 = scmp.ne.s32.totalorder %s45, %s46
      %p57 = scmp.eq.s32.totalorder %s23, 0
      %p58 = por %p56, %p57
      %p59 = scmp.ne.s32.totalorder %s45, %s46
      %p60 = scmp.eq.s32.totalorder %s24, 1
      %p61 = por %p59, %p60
      %p63 = scmp.ne.s32.totalorder %s46, %s62
      %p64 = scmp.eq.s32.totalorder %s24, 0
      %p65 = por %p63, %p64
      %s66 = ssub.s32 %s25, %s37
      %p67 = scmp.eq.s32.totalorder %s66, 0
      %s69 = sadd.s32 %s68, 1
      %s70 = scalar_select %p67, %s68, %s69
      %p73 = pneg %p67
      %p74 = scmp.eq.s32.totalorder %s18, 1
      %p75 = por %p73, %p74
      %p76 = scmp.ne.s32.totalorder %s68, %s71
      %p77 = scmp.eq.s32.totalorder %s18, 0
      %p78 = por %p76, %p77
      %p79 = scmp.ne.s32.totalorder %s68, %s71
      %p80 = scmp.eq.s32.totalorder %s23, 1
      %p81 = por %p79, %p80
      %p82 = scmp.ne.s32.totalorder %s71, %s72
      %p83 = scmp.eq.s32.totalorder %s23, 0
      %p84 = por %p82, %p83
      %p85 = scmp.ne.s32.totalorder %s71, %s72
      %p86 = scmp.eq.s32.totalorder %s24, 1
      %p87 = por %p85, %p86
      %p89 = scmp.ne.s32.totalorder %s72, %s88
      %p90 = scmp.eq.s32.totalorder %s24, 0
      %p91 = por %p89, %p90
      %s92 = ssub.s32 %s25, %s37
      %p93 = scmp.eq.s32.totalorder %s92, 0
      %s95 = sadd.s32 %s94, 1
      %s96 = scalar_select %p93, %s94, %s95
      %p99 = pneg %p93
      %p100 = scmp.eq.s32.totalorder %s18, 1
      %p101 = por %p99, %p100
      %p102 = scmp.ne.s32.totalorder %s94, %s97
      %p103 = scmp.eq.s32.totalorder %s18, 0
      %p104 = por %p102, %p103
      %p105 = scmp.ne.s32.totalorder %s94, %s97
      %p106 = scmp.eq.s32.totalorder %s23, 1
      %p107 = por %p105, %p106
      %p108 = scmp.ne.s32.totalorder %s97, %s98
      %p109 = scmp.eq.s32.totalorder %s23, 0
      %p110 = por %p108, %p109
      %p111 = scmp.ne.s32.totalorder %s97, %s98
      %p112 = scmp.eq.s32.totalorder %s24, 1
      %p113 = por %p111, %p112
      %p115 = scmp.ne.s32.totalorder %s98, %s114
      %p116 = scmp.eq.s32.totalorder %s24, 0
      %p117 = por %p115, %p116
      %p118 = scmp.le.s32.totalorder 1, %s18
      %p119 = scmp.lt.s32.totalorder %s18, 3
      %p120 = pnand %p118, %p119
      %p121 = pneg %p120
      // Predicated region
      $region9: #{tpu_custom_call.1} parent=5 // pred_check
        _
      $region10: #{tpu_custom_call.1} parent=5 // pred_check_branch
        %123 = sbr.rel (%p120) target = $region12
      $region11: #{tpu_custom_call.1} parent=5 // pred_region
        %s124 = ssub.s32 %s18, 1
      $region12: #{tpu_custom_call.1} parent=5 // pred_fallthru
        _
      %p125 = scmp.lt.s32.totalorder %s18, 2
      // Predicated region
      $region13: #{tpu_custom_call.1} parent=5 // pred_check
        %p126 = pneg %p125
      $region14: #{tpu_custom_call.1} parent=5 // pred_check_branch
        %128 = sbr.rel (%p126) target = $region16
      $region15: #{tpu_custom_call.1} parent=5 // pred_region
        // Predicated region
        $region17: #{tpu_custom_call.1} parent=15 // pred_check
          %p129 = pneg %p52
        $region18: #{tpu_custom_call.1} parent=15 // pred_check_branch
          %131 = sbr.rel (%p129) target = $region20
        $region19: #{tpu_custom_call.1} parent=15 // pred_region
          %s132 = sand.u32 %s42, 1
          %s133 = scalar_lea.sflag [#allocation3], %s132
          %s134 = sand.u32 %s42, 1
          %s135 = smul.addr %s134, 192
          %s136 = scalar_lea.vmem [#allocation2], %s135
          %s137 = smul.u32 8, %s26
          %s139 = ssub.s32 3072, 3072
          %140 = vsyncadd %s133, %s139
          %s141 = smul.addr %s137, 3
          %s142 = smul.addr %s25, 24
          %s143 = sadd.s32 %s141, %s142
          %s144 = smul.addr %s143, 128
          %s145 = scalar_lea.hbm %s0, %s144
          %s146 = sshll.u32 %s136, 4
          %s147 = int_to_ptr.vmem [resolvable:$true] %s146
          %152 = dma.hbm_to_vmem [thread:$0]  %s145, 3072, %s147, %s133, 384, 384, 24
        $region20: #{tpu_custom_call.1} parent=15 // pred_fallthru
          _
      $region16: #{tpu_custom_call.1} parent=5 // pred_fallthru
        _
      %p153 = scmp.le.s32.totalorder 1, %s18
      %p154 = scmp.lt.s32.totalorder %s18, 3
      %p155 = pnand %p153, %p154
      %p156 = pneg %p155
      // Predicated region
      $region21: #{tpu_custom_call.1} parent=5 // pred_check
        _
      $region22: #{tpu_custom_call.1} parent=5 // pred_check_branch
        %158 = sbr.rel (%p155) target = $region24
      $region23: #{tpu_custom_call.1} parent=5 // pred_region
        %s159 = ssub.s32 %s18, 1
        %s160 = sand.u32 %s45, 1
        %s161 = scalar_lea.sflag [#allocation3], %s160
        %s162 = sand.u32 %s45, 1
        %s163 = smul.addr %s162, 192
        %s164 = scalar_lea.vmem [#allocation2], %s163
        // Predicated region
        $region25: #{tpu_custom_call.1} parent=23 // pred_check
          %p165 = pneg %p58
        $region26: #{tpu_custom_call.1} parent=23 // pred_check_branch
          %167 = sbr.rel (%p165) target = $region28
        $region27: #{tpu_custom_call.1} parent=23 // pred_region
          %168 = dma.done %s161, 3072
        $region28: #{tpu_custom_call.1} parent=23 // pred_fallthru
          _
        %s169 = sand.u32 %s45, 1
        %s170 = scalar_lea.sflag [#allocation3], %s169
        %s171 = sand.u32 %s45, 1
        %s172 = smul.addr %s171, 192
        %s173 = scalar_lea.vmem [#allocation2], %s172
        %p174 = pneg %p58
        %p175 = pneg %p55
        %p176 = pneg %p84
        %p177 = pneg %p81
        %s178 = sand.u32 %s71, 1
        %s179 = scalar_lea.sflag [#allocation4], %s178
        %s180 = sand.u32 %s71, 1
        %s181 = smul.addr %s180, 3
        %s182 = scalar_lea.vmem [#allocation5], %s181
        %p183 = pneg %p110
        %p184 = pneg %p107
        %s185 = sand.u32 %s97, 1
        %s186 = scalar_lea.sflag [#allocation7], %s185
        %s187 = sand.u32 %s97, 1
        %s188 = smul.addr %s187, 3
        %s189 = scalar_lea.vmem [#allocation6], %s188
        %s190 = smul.u32 8, %s28
        %p191 = scmp.eq.s32.totalorder %s28, 0
        // Predicated region
        $region29: #{tpu_custom_call.1} parent=23 // pred_check
          %p192 = pneg %p191
        $region30: #{tpu_custom_call.1} parent=23 // pred_check_branch
          %194 = sbr.rel (%p192) target = $region32
        $region31: #{tpu_custom_call.1} parent=23 // pred_region
          %v195 = vlaneseq
          %vm196 = vcmp.ge.s32.totalorder %v195, 0
          %vm197 = vcmp.lt.s32.totalorder %v195, 320
          %vm198 = vmand %vm196, %vm197
          %199 = vst.msk [vmem:[%s182] sm:$0x7] %vm198, 0.0
          %200 = vst.msk [vmem:[%s189] sm:$0x7] %vm198, 0.0
        $region32: #{tpu_custom_call.1} parent=23 // pred_fallthru
          _
        %v201 = vld [vmem:[%s164] sm:$0xff]
        %v202 = vld [vmem:[%s164 + $0x8] sm:$0xff]
        %v203 = vld [vmem:[%s164 + $0x10] sm:$0xff]
        %v204 = vld [vmem:[%s164 + $0x18] sm:$0xff]
        %v205 = vld [vmem:[%s164 + $0x20] sm:$0xff]
        %v206 = vld [vmem:[%s164 + $0x28] sm:$0xff]
        %v207 = vld [vmem:[%s164 + $0x30] sm:$0xff]
        %v208 = vld [vmem:[%s164 + $0x38] sm:$0xff]
        %v209 = vld [vmem:[%s164 + $0x40] sm:$0xff]
        %v210 = vld [vmem:[%s164 + $0x48] sm:$0xff]
        %v211 = vld [vmem:[%s164 + $0x50] sm:$0xff]
        %v212 = vld [vmem:[%s164 + $0x58] sm:$0xff]
        %v213 = vld [vmem:[%s164 + $0x60] sm:$0xff]
        %v214 = vld [vmem:[%s164 + $0x68] sm:$0xff]
        %v215 = vld [vmem:[%s164 + $0x70] sm:$0xff]
        %v216 = vld [vmem:[%s164 + $0x78] sm:$0xff]
        %v217 = vld [vmem:[%s164 + $0x80] sm:$0xff]
        %v218 = vld [vmem:[%s164 + $0x88] sm:$0xff]
        %v219 = vld [vmem:[%s164 + $0x90] sm:$0xff]
        %v220 = vld [vmem:[%s164 + $0x98] sm:$0xff]
        %v221 = vld [vmem:[%s164 + $0xa0] sm:$0xff]
        %v222 = vld [vmem:[%s164 + $0xa8] sm:$0xff]
        %v223 = vld [vmem:[%s164 + $0xb0] sm:$0xff]
        %v224 = vld [vmem:[%s164 + $0xb8] sm:$0xff]
        %v225 = vld [vmem:[%s182] sm:$0x7]
        %v226 = vadd.f32 %v201, %v204
        %v227 = vadd.f32 %v226, %v207
        %v228 = vadd.f32 %v227, %v210
        %v229 = vadd.f32 %v228, %v213
        %v230 = vadd.f32 %v229, %v216
        %v231 = vadd.f32 %v230, %v219
        %v232 = vadd.f32 %v231, %v222
        %v233 = vrot.slane %v232, 4
        %v234 = vadd.f32 %v232, %v233
        %v235 = vrot.slane %v234, 2
        %v236 = vadd.f32 %v234, %v235
        %v237 = vrot.slane %v236, 1
        %v238 = vadd.f32 %v236, %v237
        %v239 = vadd.f32 %v202, %v205
        %v240 = vadd.f32 %v239, %v208
        %v241 = vadd.f32 %v240, %v211
        %v242 = vadd.f32 %v241, %v214
        %v243 = vadd.f32 %v242, %v217
        %v244 = vadd.f32 %v243, %v220
        %v245 = vadd.f32 %v244, %v223
        %v246 = vrot.slane %v245, 4
        %v247 = vadd.f32 %v245, %v246
        %v248 = vrot.slane %v247, 2
        %v249 = vadd.f32 %v247, %v248
        %v250 = vrot.slane %v249, 1
        %v251 = vadd.f32 %v249, %v250
        %vm252 = vcmask 523264
        %v253 = vsel %vm252, %v203, 0.0
        %v254 = vsel %vm252, %v206, 0.0
        %v255 = vadd.f32 %v253, %v254
        %v256 = vsel %vm252, %v209, 0.0
        %v257 = vadd.f32 %v255, %v256
        %v258 = vsel %vm252, %v212, 0.0
        %v259 = vadd.f32 %v257, %v258
        %v260 = vsel %vm252, %v215, 0.0
        %v261 = vadd.f32 %v259, %v260
        %v262 = vsel %vm252, %v218, 0.0
        %v263 = vadd.f32 %v261, %v262
        %v264 = vsel %vm252, %v221, 0.0
        %v265 = vadd.f32 %v263, %v264
        %v266 = vsel %vm252, %v224, 0.0
        %v267 = vadd.f32 %v265, %v266
        %v268 = vrot.slane %v267, 4
        %v269 = vadd.f32 %v267, %v268
        %v270 = vrot.slane %v269, 2
        %v271 = vadd.f32 %v269, %v270
        %v272 = vrot.slane %v271, 1
        %v273 = vadd.f32 %v271, %v272
        %v277 = vcombine.low %v238, %v251
        %v279 = vunpack.c.l.s4 1966171168
        %v280 = vunpack.c.0.s8 %v279
        %v281 = vlaneseq
        %v282 = vshrl.u32 %v281, 7
        %v283 = vsub.s32 %v280, %v282
        %v284 = vrot.slane %v277, %v283
        %v286 = vunpack.c.l.s4 1966171168
        %v287 = vunpack.c.0.s8 %v286
        %v288 = vlaneseq
        %v289 = vshrl.u32 %v288, 7
        %v290 = vsub.s32 %v287, %v289
        %v291 = vrot.slane %v273, %v290
        %v292 = vcombine.low %v284, %v291
        %v294 = vunpack.c.l.s4 1966171168
        %v295 = vunpack.c.0.s8 %v294
        %v296 = vlaneseq
        %v297 = vshrl.u32 %v296, 7
        %v298 = vsub.s32 %v295, %v297
        %v299 = vrot.slane %v292, %v298
        %v301 = vadd.f32 %v225, %v299
        %v302 = vlaneseq
        %vm303 = vcmp.ge.s32.totalorder %v302, 0
        %vm304 = vcmp.lt.s32.totalorder %v302, 320
        %vm305 = vmand %vm303, %vm304
        %306 = vst.msk [vmem:[%s182] sm:$0x7] %vm305, %v301
        %v307 = vld [vmem:[%s189] sm:$0x7]
        %v308 = vmul.f32 %v201, %v201
        %v309 = vmul.f32 %v202, %v202
        %v310 = vmul.f32 %v203, %v203
        %v311 = vmul.f32 %v204, %v204
        %v312 = vmul.f32 %v205, %v205
        %v313 = vmul.f32 %v206, %v206
        %v314 = vmul.f32 %v207, %v207
        %v315 = vmul.f32 %v208, %v208
        %v316 = vmul.f32 %v209, %v209
        %v317 = vmul.f32 %v210, %v210
        %v318 = vmul.f32 %v211, %v211
        %v319 = vmul.f32 %v212, %v212
        %v320 = vmul.f32 %v213, %v213
        %v321 = vmul.f32 %v214, %v214
        %v322 = vmul.f32 %v215, %v215
        %v323 = vmul.f32 %v216, %v216
        %v324 = vmul.f32 %v217, %v217
        %v325 = vmul.f32 %v218, %v218
        %v326 = vmul.f32 %v219, %v219
        %v327 = vmul.f32 %v220, %v220
        %v328 = vmul.f32 %v221, %v221
        %v329 = vmul.f32 %v222, %v222
        %v330 = vmul.f32 %v223, %v223
        %v331 = vmul.f32 %v224, %v224
        %v332 = vadd.f32 %v308, %v311
        %v333 = vadd.f32 %v332, %v314
        %v334 = vadd.f32 %v333, %v317
        %v335 = vadd.f32 %v334, %v320
        %v336 = vadd.f32 %v335, %v323
        %v337 = vadd.f32 %v336, %v326
        %v338 = vadd.f32 %v337, %v329
        %v339 = vrot.slane %v338, 4
        %v340 = vadd.f32 %v338, %v339
        %v341 = vrot.slane %v340, 2
        %v342 = vadd.f32 %v340, %v341
        %v343 = vrot.slane %v342, 1
        %v344 = vadd.f32 %v342, %v343
        %v345 = vadd.f32 %v309, %v312
        %v346 = vadd.f32 %v345, %v315
        %v347 = vadd.f32 %v346, %v318
        %v348 = vadd.f32 %v347, %v321
        %v349 = vadd.f32 %v348, %v324
        %v350 = vadd.f32 %v349, %v327
        %v351 = vadd.f32 %v350, %v330
        %v352 = vrot.slane %v351, 4
        %v353 = vadd.f32 %v351, %v352
        %v354 = vrot.slane %v353, 2
        %v355 = vadd.f32 %v353, %v354
        %v356 = vrot.slane %v355, 1
        %v357 = vadd.f32 %v355, %v356
        %v358 = vsel %vm252, %v310, 0.0
        %v359 = vsel %vm252, %v313, 0.0
        %v360 = vadd.f32 %v358, %v359
        %v361 = vsel %vm252, %v316, 0.0
        %v362 = vadd.f32 %v360, %v361
        %v363 = vsel %vm252, %v319, 0.0
        %v364 = vadd.f32 %v362, %v363
        %v365 = vsel %vm252, %v322, 0.0
        %v366 = vadd.f32 %v364, %v365
        %v367 = vsel %vm252, %v325, 0.0
        %v368 = vadd.f32 %v366, %v367
        %v369 = vsel %vm252, %v328, 0.0
        %v370 = vadd.f32 %v368, %v369
        %v371 = vsel %vm252, %v331, 0.0
        %v372 = vadd.f32 %v370, %v371
        %v373 = vrot.slane %v372, 4
        %v374 = vadd.f32 %v372, %v373
        %v375 = vrot.slane %v374, 2
        %v376 = vadd.f32 %v374, %v375
        %v377 = vrot.slane %v376, 1
        %v378 = vadd.f32 %v376, %v377
        %v382 = vcombine.low %v344, %v357
        %v384 = vunpack.c.l.s4 1966171168
        %v385 = vunpack.c.0.s8 %v384
        %v386 = vlaneseq
        %v387 = vshrl.u32 %v386, 7
        %v388 = vsub.s32 %v385, %v387
        %v389 = vrot.slane %v382, %v388
        %v391 = vunpack.c.l.s4 1966171168
        %v392 = vunpack.c.0.s8 %v391
        %v393 = vlaneseq
        %v394 = vshrl.u32 %v393, 7
        %v395 = vsub.s32 %v392, %v394
        %v396 = vrot.slane %v378, %v395
        %v397 = vcombine.low %v389, %v396
        %v399 = vunpack.c.l.s4 1966171168
        %v400 = vunpack.c.0.s8 %v399
        %v401 = vlaneseq
        %v402 = vshrl.u32 %v401, 7
        %v403 = vsub.s32 %v400, %v402
        %v404 = vrot.slane %v397, %v403
        %v406 = vadd.f32 %v307, %v404
        %407 = vst.msk [vmem:[%s189] sm:$0x7] %vm305, %v406
        %s408 = sand.u32 %s71, 1
        %s409 = scalar_lea.sflag [#allocation4], %s408
        %s410 = sand.u32 %s71, 1
        %s411 = smul.addr %s410, 3
        %s412 = scalar_lea.vmem [#allocation5], %s411
        %s413 = sand.u32 %s97, 1
        %s414 = scalar_lea.sflag [#allocation7], %s413
        %s415 = sand.u32 %s97, 1
        %s416 = smul.addr %s415, 3
        %s417 = scalar_lea.vmem [#allocation6], %s416
        // Predicated region
        $region33: #{tpu_custom_call.1} parent=23 // pred_check
          %p418 = pneg %p81
        $region34: #{tpu_custom_call.1} parent=23 // pred_check_branch
          %420 = sbr.rel (%p418) target = $region36
        $region35: #{tpu_custom_call.1} parent=23 // pred_region
          %s422 = ssub.s32 48, 48
          %423 = vsyncadd %s409, %s422
          %s424 = smul.addr %s27, 3
          %s425 = smul.addr %s424, 16
          %s426 = scalar_lea.hbm %s1, %s425
          %s428 = sshll.u32 %s412, 4
          %s429 = int_to_ptr.vmem [resolvable:$true] %s428
          %431 = dma.vmem_to_hbm [thread:$0]  %s429, 48, %s426, %s409
        $region36: #{tpu_custom_call.1} parent=23 // pred_fallthru
          _
        // Predicated region
        $region37: #{tpu_custom_call.1} parent=23 // pred_check
          %p432 = pneg %p107
        $region38: #{tpu_custom_call.1} parent=23 // pred_check_branch
          %434 = sbr.rel (%p432) target = $region40
        $region39: #{tpu_custom_call.1} parent=23 // pred_region
          %s436 = ssub.s32 48, 48
          %437 = vsyncadd %s414, %s436
          %s438 = smul.addr %s27, 3
          %s439 = smul.addr %s438, 16
          %s440 = scalar_lea.hbm %s2, %s439
          %s442 = sshll.u32 %s417, 4
          %s443 = int_to_ptr.vmem [resolvable:$true] %s442
          %445 = dma.vmem_to_hbm [thread:$0]  %s443, 48, %s440, %s414
        $region40: #{tpu_custom_call.1} parent=23 // pred_fallthru
          _
      $region24: #{tpu_custom_call.1} parent=5 // pred_fallthru
        _
      %p446 = scmp.le.s32.totalorder 2, %s18
      // Predicated region
      $region41: #{tpu_custom_call.1} parent=5 // pred_check
        %p447 = pneg %p446
      $region42: #{tpu_custom_call.1} parent=5 // pred_check_branch
        %449 = sbr.rel (%p447) target = $region44
      $region43: #{tpu_custom_call.1} parent=5 // pred_region
        %s450 = ssub.s32 %s18, 2
        // Predicated region
        $region45: #{tpu_custom_call.1} parent=43 // pred_check
          %p451 = pneg %p87
        $region46: #{tpu_custom_call.1} parent=43 // pred_check_branch
          %453 = sbr.rel (%p451) target = $region48
        $region47: #{tpu_custom_call.1} parent=43 // pred_region
          %s454 = sand.u32 %s72, 1
          %s455 = scalar_lea.sflag [#allocation4], %s454
          %s456 = sand.u32 %s72, 1
          %s457 = smul.addr %s456, 3
          %s458 = scalar_lea.vmem [#allocation5], %s457
          %459 = dma.done %s455, 48
        $region48: #{tpu_custom_call.1} parent=43 // pred_fallthru
          _
        // Predicated region
        $region49: #{tpu_custom_call.1} parent=43 // pred_check
          %p460 = pneg %p113
        $region50: #{tpu_custom_call.1} parent=43 // pred_check_branch
          %462 = sbr.rel (%p460) target = $region52
        $region51: #{tpu_custom_call.1} parent=43 // pred_region
          %s463 = sand.u32 %s98, 1
          %s464 = scalar_lea.sflag [#allocation7], %s463
          %s465 = sand.u32 %s98, 1
          %s466 = smul.addr %s465, 3
          %s467 = scalar_lea.vmem [#allocation6], %s466
          %468 = dma.done %s464, 48
        $region52: #{tpu_custom_call.1} parent=43 // pred_fallthru
          _
      $region44: #{tpu_custom_call.1} parent=5 // pred_fallthru
        _
    $region6: #{tpu_custom_call.1} parent=1 // loop_footer
      %s22 = sadd.s32 1, %s18
    $region7: #{tpu_custom_call.1} parent=1 // loop_footer_branch
      %17 = sbr.rel target = $region3
    $region8: #{tpu_custom_call.1} parent=1 // loop_exit
      _
    %469 = vsyncpa [#allocation3], 1
    %s470 = scalar_lea.sflag [#allocation3], 1
    %471 = vsyncpa %s470, 1
    %472 = vsyncpa [#allocation4], 1
    %s473 = scalar_lea.sflag [#allocation4], 1
    %474 = vsyncpa %s473, 1
    %475 = vsyncpa [#allocation7], 1
    %s476 = scalar_lea.sflag [#allocation7], 1
    %477 = vsyncpa %s476, 1

</llo_original>
